<compile_context>
chip_gen: v6e
topology: v6e:2x2x1
jax: 0.10.0
libtpu: 0.0.40
codegen_flags: <defaults>
</compile_context>

<pallas_src>
import functools

import jax
import jax.numpy as jnp
from jax.experimental import pallas as pl
from jax.experimental.pallas import tpu as pltpu


def _round_up(x, m):
    return (x + m - 1) // m * m


def _cdiv(a, b):
    return (a + b - 1) // b


def _coordconv_kernel(x_ref, wm_ref, wc_ref, b_ref, o_ref, cb_ref, *,
                      H, W, T, with_r):
    # x_ref : (C, T)        input tile (batch dim squeezed away)
    # wm_ref: (C_out, C)    main 1x1-conv weight (grid-resident)
    # wc_ref: (C_out, 2|3)  coordinate-channel weights (grid-resident)
    # b_ref : (C_out, 1)    bias (grid-resident)
    # o_ref : (C_out, T)    output tile
    # cb_ref: (C_out, T)    VMEM scratch: coord term + bias, reused over batch
    t = pl.program_id(0)   # spatial-tile index (outer, parallel)
    b = pl.program_id(1)   # batch index       (inner, arbitrary)

    # Batch-invariant coordinate/bias term: compute once per spatial tile.
    @pl.when(b == 0)
    def _():
        # Global flat element index of each lane in this tile, generated in
        # the lane-flat layout (int32 iota + offset is exact; float divmod by
        # W is exact while H*W < ~4M, ample for image-sized inputs).
        idx = (jax.lax.broadcasted_iota(jnp.int32, (1, T), 1)
               + t * T).astype(jnp.float32)
        row = jnp.floor((idx + 0.5) * jnp.float32(1.0 / W))   # == idx // W
        col = idx - row * jnp.float32(W)                      # == idx %  W
        # AddCoords semantics: xx varies along x_dim (=H), yy along y_dim (=W).
        xx = row * jnp.float32(2.0 / max(H - 1, 1)) - 1.0
        yy = col * jnp.float32(2.0 / max(W - 1, 1)) - 1.0
        wc = wc_ref[...]
        cb = wc[:, 0:1] * xx + wc[:, 1:2] * yy + b_ref[...]
        if with_r:
            rr = jnp.sqrt((xx - 0.5) ** 2 + (yy - 0.5) ** 2)
            cb = cb + wc[:, 2:3] * rr
        cb_ref[...] = cb

    # 1x1 conv over the real input channels: one MXU matmul per step.
    acc = jnp.dot(wm_ref[...], x_ref[...], preferred_element_type=jnp.float32)
    o_ref[...] = (acc + cb_ref[...]).astype(o_ref.dtype)


def coordconv(x, weight, bias, *, with_r=False, lanes_per_tile=None):
    """CoordConv forward: AddCoords followed by Conv2d(kernel_size=1).

    x      : (N, C, H, W) float32
    weight : (C_out, C + 2 [+1 if with_r])   1x1 conv weight (kh/kw squeezed)
    bias   : (C_out,)
    """
    N, C, H, W = x.shape
    C_out = weight.shape[0]
    n_coord = 3 if with_r else 2
    assert weight.shape[1] == C + n_coord, "weight / with_r mismatch"
    HW = H * W
    hw128 = _round_up(HW, 128)

    # --- Tile selection -----------------------------------------------------
    # Per-lane VMEM footprint: input (x2 double-buffer) + output (x2) + scratch.
    bytes_per_lane = 4 * (2 * C + 3 * C_out)
    vmem_cap_T = max(((48 << 20) // max(bytes_per_lane, 1)) // 128 * 128, 128)
    if lanes_per_tile is None:
        # ~2 MiB of (input + output) per grid step so DMA dwarfs step overhead.
        target_T = (2 << 20) // (4 * (C + C_out))
        T = max(min(_round_up(target_T, 128), hw128, 64 * 1024, vmem_cap_T), 128)
    else:
        T = max(min(_round_up(lanes_per_tile, 128), hw128, vmem_cap_T), 128)
    num_t = _cdiv(hw128, T)
    T = _round_up(_cdiv(hw128, num_t), 128)   # balance tiles, minimize pad waste
    HW_pad = num_t * T

    x_flat = x.reshape(N, C, HW)
    if HW_pad != HW:
        x_flat = jnp.pad(x_flat, ((0, 0), (0, 0), (0, HW_pad - HW)))

    # Split the weight in the wrapper (no in-kernel lane slicing of weight).
    w_main = weight[:, :C]          # (C_out, C)
    w_coord = weight[:, C:]         # (C_out, n_coord)
    bias2d = bias.reshape(C_out, 1)

    kernel = functools.partial(_coordconv_kernel, H=H, W=W, T=T, with_r=with_r)

    # Advisory hints for XLA scheduling + explicit VMEM budget.
    bytes_accessed = 4 * (N * C * HW_pad + N * C_out * HW_pad
                          + C_out * (C + n_coord + 1))
    flops = (2 * N * C_out * C * HW_pad          # main matmul
             + 2 * N * C_out * HW_pad            # + coord_bias add
             + num_t * (2 * n_coord + 6) * C_out * T)   # per-tile coord term
    transcendentals = num_t * T if with_r else 0
    vmem_limit = int(min(max(bytes_per_lane * T + (4 << 20), 16 << 20),
                         60 << 20))

    out_flat = pl.pallas_call(
        kernel,
        out_shape=jax.ShapeDtypeStruct((N, C_out, HW_pad), x.dtype),
        grid_spec=pltpu.PrefetchScalarGridSpec(
            num_scalar_prefetch=0,
            grid=(num_t, N),
            in_specs=[
                pl.BlockSpec((None, C, T), lambda t, b: (b, 0, t)),
                pl.BlockSpec((C_out, C), lambda t, b: (0, 0)),
                pl.BlockSpec((C_out, n_coord), lambda t, b: (0, 0)),
                pl.BlockSpec((C_out, 1), lambda t, b: (0, 0)),
            ],
            out_specs=pl.BlockSpec((None, C_out, T), lambda t, b: (b, 0, t)),
            scratch_shapes=[pltpu.VMEM((C_out, T), jnp.float32)],
        ),
        compiler_params=pltpu.CompilerParams(
            dimension_semantics=("parallel", "arbitrary"),
            vmem_limit_bytes=vmem_limit),
        cost_estimate=pl.CostEstimate(flops=flops,
                                      transcendentals=transcendentals,
                                      bytes_accessed=bytes_accessed),
    )(x_flat, w_main, w_coord, bias2d)

    out = out_flat[:, :, :HW] if HW_pad != HW else out_flat
    return out.reshape(N, C_out, H, W)


def _reference(x, weight, bias, *, with_r=False):
    """Pure-JAX reference of AddCoords + 1x1 conv (NCHW)."""
    N, C, H, W = x.shape
    ii = jnp.arange(H, dtype=jnp.float32)[:, None] / (H - 1) * 2.0 - 1.0
    jj = jnp.arange(W, dtype=jnp.float32)[None, :] / (W - 1) * 2.0 - 1.0
    xx = jnp.broadcast_to(ii, (H, W))
    yy = jnp.broadcast_to(jj, (H, W))
    chans = [x,
             jnp.broadcast_to(xx, (N, 1, H, W)),
             jnp.broadcast_to(yy, (N, 1, H, W))]
    if with_r:
        rr = jnp.sqrt((xx - 0.5) ** 2 + (yy - 0.5) ** 2)
        chans.append(jnp.broadcast_to(rr, (N, 1, H, W)))
    aug = jnp.concatenate(chans, axis=1)  # (N, C_aug, H, W)
    out = jnp.einsum('oc,nchw->nohw', weight, aug) + bias[None, :, None, None]
    return out


if __name__ == "__main__":
    key = jax.random.PRNGKey(0)

    # Primary check: small CoordConv (with_r=False), single spatial tile.
    N, C_in, H, W = 2, 4, 16, 16
    C_out = 8
    with_r = False
    C_aug = C_in + 2 + (1 if with_r else 0)

    k_x, k_w, k_b = jax.random.split(key, 3)
    x = jax.random.normal(k_x, (N, C_in, H, W), dtype=jnp.float32)
    bound = 1.0 / (C_aug ** 0.5)
    weight = jax.random.uniform(k_w, (C_out, C_aug), jnp.float32, -bound, bound)
    bias = jax.random.uniform(k_b, (C_out,), jnp.float32, -bound, bound)

    out = jax.block_until_ready(coordconv(x, weight, bias, with_r=with_r))
    ref = _reference(x, weight, bias, with_r=with_r)
    assert out.shape == (N, C_out, H, W)
    assert jnp.allclose(out, ref, atol=1e-5, rtol=1e-5), "mismatch (base case)"

    # Secondary check: with_r=True, ragged HW (not a multiple of 128) and a
    # small tile so the multi-tile / padding / global-offset paths execute.
    N2, C2, H2, W2, C_out2 = 2, 3, 20, 20, 8
    C_aug2 = C2 + 3
    k_x2, k_w2, k_b2 = jax.random.split(jax.random.PRNGKey(1), 3)
    x2 = jax.random.normal(k_x2, (N2, C2, H2, W2), dtype=jnp.float32)
    b2 = 1.0 / (C_aug2 ** 0.5)
    w2 = jax.random.uniform(k_w2, (C_out2, C_aug2), jnp.float32, -b2, b2)
    bias2 = jax.random.uniform(k_b2, (C_out2,), jnp.float32, -b2, b2)

    out2 = jax.block_until_ready(
        coordconv(x2, w2, bias2, with_r=True, lanes_per_tile=128))
    ref2 = _reference(x2, w2, bias2, with_r=True)
    assert out2.shape == (N2, C_out2, H2, W2)
    assert jnp.allclose(out2, ref2, atol=1e-5, rtol=1e-5), "mismatch (tiled)"

    print("KERNEL_OK")
</pallas_src>

<mosaic_0001>
module attributes {stable_mosaic.version = 11 : i64} {
  func.func @_coordconv_kernel(%arg0: i32, %arg1: i32, %arg2: memref<1x4x256xf32, #tpu.memory_space<vmem>>, %arg3: memref<8x4xf32, #tpu.memory_space<vmem>>, %arg4: memref<8x2xf32, #tpu.memory_space<vmem>>, %arg5: memref<8x1xf32, #tpu.memory_space<vmem>>, %arg6: memref<1x8x256xf32, #tpu.memory_space<vmem>>, %arg7: memref<8x256xf32, #tpu.memory_space<vmem>>) attributes {dimension_semantics = [#tpu.dimension_semantics<parallel>, #tpu.dimension_semantics<arbitrary>], iteration_bounds = array<i64: 1, 2>, scalar_prefetch = 0 : i64, scratch_operands = 1 : i64, tpu.core_type = #tpu.core_type<tc>, window_params = [{transform_indices = @transform_0, window_bounds = array<i64: 1, 4, 256>}, {pipeline_mode = #tpu.pipeline_mode<synchronous>, transform_indices = @transform_1, window_bounds = array<i64: 8, 4>}, {pipeline_mode = #tpu.pipeline_mode<synchronous>, transform_indices = @transform_2, window_bounds = array<i64: 8, 2>}, {pipeline_mode = #tpu.pipeline_mode<synchronous>, transform_indices = @transform_3, window_bounds = array<i64: 8, 1>}, {transform_indices = @transform_4, window_bounds = array<i64: 1, 8, 256>}]} {
    %c0_i32 = arith.constant 0 : i32
    %0 = arith.cmpi eq, %arg1, %c0_i32 : i32
    %1 = arith.extui %0 : i1 to i32
    %c0_i32_0 = arith.constant 0 : i32
    %2 = arith.cmpi ne, %1, %c0_i32_0 : i32
    scf.if %2 {
      %12 = tpu.iota {dimensions = array<i32: 1>} : vector<1x256xi32>
      %c256_i32 = arith.constant 256 : i32
      %13 = arith.muli %arg0, %c256_i32 : i32
      %14 = vector.broadcast %13 : i32 to vector<1x256xi32>
      %15 = arith.addi %12, %14 : vector<1x256xi32>
      %16 = arith.sitofp %15 : vector<1x256xi32> to vector<1x256xf32>
      %cst_10 = arith.constant 5.000000e-01 : f32
      %17 = vector.broadcast %cst_10 : f32 to vector<1x256xf32>
      %18 = arith.addf %16, %17 : vector<1x256xf32>
      %cst_11 = arith.constant 6.250000e-02 : f32
      %19 = vector.broadcast %cst_11 : f32 to vector<1x256xf32>
      %20 = arith.mulf %18, %19 : vector<1x256xf32>
      %21 = math.floor %20 : vector<1x256xf32>
      %cst_12 = arith.constant 1.600000e+01 : f32
      %22 = vector.broadcast %cst_12 : f32 to vector<1x256xf32>
      %23 = arith.mulf %21, %22 : vector<1x256xf32>
      %24 = arith.subf %16, %23 : vector<1x256xf32>
      %cst_13 = arith.constant 0.13333334 : f32
      %25 = vector.broadcast %cst_13 : f32 to vector<1x256xf32>
      %26 = arith.mulf %21, %25 : vector<1x256xf32>
      %cst_14 = arith.constant 1.000000e+00 : f32
      %27 = vector.broadcast %cst_14 : f32 to vector<1x256xf32>
      %28 = arith.subf %26, %27 : vector<1x256xf32>
      %cst_15 = arith.constant 0.13333334 : f32
      %29 = vector.broadcast %cst_15 : f32 to vector<1x256xf32>
      %30 = arith.mulf %24, %29 : vector<1x256xf32>
      %cst_16 = arith.constant 1.000000e+00 : f32
      %31 = vector.broadcast %cst_16 : f32 to vector<1x256xf32>
      %32 = arith.subf %30, %31 : vector<1x256xf32>
      %c0_17 = arith.constant 0 : index
      %c0_18 = arith.constant 0 : index
      %33 = vector.load %arg4[%c0_17, %c0_18] : memref<8x2xf32, #tpu.memory_space<vmem>>, vector<8x2xf32>
      %34 = vector.extract_strided_slice %33 {offsets = [0, 0], sizes = [8, 1], strides = [1, 1]} : vector<8x2xf32> to vector<8x1xf32>
      %35 = vector.broadcast %34 : vector<8x1xf32> to vector<8x256xf32>
      %36 = vector.broadcast %28 : vector<1x256xf32> to vector<8x256xf32>
      %37 = arith.mulf %35, %36 : vector<8x256xf32>
      %38 = vector.extract_strided_slice %33 {offsets = [0, 1], sizes = [8, 1], strides = [1, 1]} : vector<8x2xf32> to vector<8x1xf32>
      %39 = vector.broadcast %38 : vector<8x1xf32> to vector<8x256xf32>
      %40 = vector.broadcast %32 : vector<1x256xf32> to vector<8x256xf32>
      %41 = arith.mulf %39, %40 : vector<8x256xf32>
      %42 = arith.addf %37, %41 : vector<8x256xf32>
      %c0_19 = arith.constant 0 : index
      %c0_20 = arith.constant 0 : index
      %43 = vector.load %arg5[%c0_19, %c0_20] : memref<8x1xf32, #tpu.memory_space<vmem>>, vector<8x1xf32>
      %44 = vector.broadcast %43 : vector<8x1xf32> to vector<8x256xf32>
      %45 = arith.addf %42, %44 : vector<8x256xf32>
      %c0_21 = arith.constant 0 : index
      %c0_22 = arith.constant 0 : index
      %46 = vector.load %arg7[%c0_21, %c0_22] : memref<8x256xf32, #tpu.memory_space<vmem>>, vector<8x256xf32>
      tpu.vector_store %arg7[%c0_21, %c0_22], %45 {strides = array<i32>} : memref<8x256xf32, #tpu.memory_space<vmem>>, vector<8x256xf32>,
    } else {
    }
    %c0 = arith.constant 0 : index
    %c0_1 = arith.constant 0 : index
    %3 = vector.load %arg3[%c0, %c0_1] : memref<8x4xf32, #tpu.memory_space<vmem>>, vector<8x4xf32>
    %c0_2 = arith.constant 0 : index
    %c0_3 = arith.constant 0 : index
    %c0_4 = arith.constant 0 : index
    %4 = vector.load %arg2[%c0_2, %c0_3, %c0_4] : memref<1x4x256xf32, #tpu.memory_space<vmem>>, vector<1x4x256xf32>
    %5 = vector.shape_cast %4 : vector<1x4x256xf32> to vector<4x256xf32>
    %cst = arith.constant dense<0.000000e+00> : vector<8x256xf32>
    %6 = tpu.matmul %3, %5, %cst {dimension_numbers = #tpu.dot_dimension_numbers<[1], [0], [0], [1], [0, 0, 1, 1], [], []>} : vector<8x4xf32>, vector<4x256xf32>, vector<8x256xf32> -> vector<8x256xf32>
    %c0_5 = arith.constant 0 : index
    %c0_6 = arith.constant 0 : index
    %7 = vector.load %arg7[%c0_5, %c0_6] : memref<8x256xf32, #tpu.memory_space<vmem>>, vector<8x256xf32>
    %8 = arith.addf %6, %7 : vector<8x256xf32>
    %c0_7 = arith.constant 0 : index
    %c0_8 = arith.constant 0 : index
    %c0_9 = arith.constant 0 : index
    %9 = vector.load %arg6[%c0_7, %c0_8, %c0_9] : memref<1x8x256xf32, #tpu.memory_space<vmem>>, vector<1x8x256xf32>
    %10 = vector.shape_cast %9 : vector<1x8x256xf32> to vector<8x256xf32>
    %11 = vector.shape_cast %8 : vector<8x256xf32> to vector<1x8x256xf32>
    tpu.vector_store %arg6[%c0_7, %c0_8, %c0_9], %11 {strides = array<i32>} : memref<1x8x256xf32, #tpu.memory_space<vmem>>, vector<1x8x256xf32>,
    return
  }
  func.func @transform_0(%arg0: i32, %arg1: i32) -> (i32, i32, i32) {
    %c0_i32 = arith.constant 0 : i32
    %c0_i32_0 = arith.constant 0 : i32
    return %arg1, %c0_i32, %arg0 : i32, i32, i32
  }
  func.func @transform_1(%arg0: i32, %arg1: i32) -> (i32, i32) {
    %c0_i32 = arith.constant 0 : i32
    %c0_i32_0 = arith.constant 0 : i32
    %c0_i32_1 = arith.constant 0 : i32
    return %c0_i32, %c0_i32_0 : i32, i32
  }
  func.func @transform_2(%arg0: i32, %arg1: i32) -> (i32, i32) {
    %c0_i32 = arith.constant 0 : i32
    %c0_i32_0 = arith.constant 0 : i32
    %c0_i32_1 = arith.constant 0 : i32
    return %c0_i32, %c0_i32_0 : i32, i32
  }
  func.func @transform_3(%arg0: i32, %arg1: i32) -> (i32, i32) {
    %c0_i32 = arith.constant 0 : i32
    %c0_i32_0 = arith.constant 0 : i32
    %c0_i32_1 = arith.constant 0 : i32
    return %c0_i32, %c0_i32_0 : i32, i32
  }
  func.func @transform_4(%arg0: i32, %arg1: i32) -> (i32, i32, i32) {
    %c0_i32 = arith.constant 0 : i32
    %c0_i32_0 = arith.constant 0 : i32
    return %arg1, %c0_i32, %arg0 : i32, i32, i32
  }
}

</mosaic_0001>

<llo_original>
// kernel: tpu_custom_call.1
$region0: #{tpu_custom_call.1}
  #allocation0 [shape = 'u32[]', space=smem, size = 0x4, offset = 0x4, fixed_abs, tag = 'smem constant byte address 0x4 - core index']
  #allocation1 [shape = 'u32[144,128]{1,0:T(1,128)}', space=vmem, size = 0x12000, scoped, tag = 'internal scratch']
  #allocation2 [shape = 'f32[8,256]{1,0:T(8,128)}', space=vmem, size = 0x2000, scoped, tag = 'scratch operand']
  %s0 = inlined_call_operand.vmem [shape: f32[2,4,256], index: 0, kind: input, shape index: {}]
  %s1 = inlined_call_operand.vmem [shape: f32[8,4], index: 1, kind: input, shape index: {}]
  %s2 = inlined_call_operand.vmem [shape: f32[8,2], index: 2, kind: input, shape index: {}]
  %s3 = inlined_call_operand.vmem [shape: f32[8,1], index: 3, kind: input, shape index: {}]
  %s4 = inlined_call_operand.hbm [shape: f32[2,8,256], index: 4, kind: output, shape index: {}]
  %s5 = sld [smem:[#allocation0]]
  $region53: #{tpu_custom_call.1} parent=0
    _
  %s7 = ssub.s32 1, %s5
  %s8 = scalar_select 0, %s7, %s5
  $region1: #{tpu_custom_call.1} parent=0
    #allocation3 [shape = 'u8[16384]{0}', space=vmem, size = 0x4000, scoped, tag = 'output window, operand 0']
    #allocation4 [shape = 's32[2]{0}', space=sflag, size = 0x8, scoped, tag = 'scoped memory for tpu_custom_call.1']
    %9 = vsyncpa [#allocation4], 0
    %s10 = scalar_lea.sflag [#allocation4], 1
    %11 = vsyncpa %s10, 0
    loop: start=0, step=1, limit=4
    $region2: #{tpu_custom_call.1} parent=1 // loop_pre_header
      _
    $region3: #{tpu_custom_call.1} parent=1 // loop_header
      %s13 = sphi 0, %s17
      %p14 = scmp.ge.s32.totalorder %s13, 4
      %s20 = sphi 0, %s32
      %s21 = sphi 0, %s28
      %s22 = sphi 0, %s20
      %s23 = sphi 0, %s21
      %s24 = sphi 0, %s22
      %s25 = sphi 0, %s23
      %s37 = sphi 0, %s39
      %s40 = sphi 0, %s37
      %s41 = sphi 0, %s40
      %s57 = sphi 0, %s41
      %s61 = sphi 0, %s61
      %s63 = sphi 0, %s61
      %s64 = sphi 0, %s63
      %s78 = sphi 0, %s64
      %s82 = sphi 0, %s82
      %s84 = sphi 0, %s82
      %s85 = sphi 0, %s84
      %s99 = sphi 0, %s85
      %s103 = sphi 0, %s103
      %s105 = sphi 0, %s103
      %s106 = sphi 0, %s105
      %s120 = sphi 0, %s106
      %s128 = sphi 0, %s130
      %s131 = sphi 0, %s128
      %s132 = sphi 0, %s131
      %s148 = sphi 0, %s132
    $region4: #{tpu_custom_call.1} parent=1 // loop_header_branch
      %16 = sbr.rel (%p14) target = $region8
    $region5: #{tpu_custom_call.1} parent=1 // loop_body
      %s18 = ssub.s32 %s13, 1
      %s19 = ssub.s32 %s13, 2
      %s26 = sadd.s32 1, %s21
      %p27 = scmp.ge.s32.totalorder %s26, 2
      %s28 = scalar_select %p27, 0, %s26
      %s29 = sadd.s32 1, %s20
      %s30 = scalar_select %p27, %s29, %s20
      %p31 = scmp.ge.s32.totalorder %s30, 1
      %s32 = scalar_select %p31, 0, %s30
      %s33 = ssub.s32 %s21, %s28
      %s34 = ssub.s32 %s20, %s32
      %s35 = sor.u32 %s33, %s34
      %p36 = scmp.eq.s32.totalorder %s35, 0
      %s38 = sadd.s32 %s37, 1
      %s39 = scalar_select %p36, %s37, %s38
      %p42 = pneg %p36
      %p43 = scmp.eq.s32.totalorder %s13, 1
      %p44 = por %p42, %p43
      %p45 = scmp.ne.s32.totalorder %s37, %s40
      %p46 = scmp.eq.s32.totalorder %s13, 0
      %p47 = por %p45, %p46
      %p48 = scmp.ne.s32.totalorder %s37, %s40
      %p49 = scmp.eq.s32.totalorder %s18, 1
      %p50 = por %p48, %p49
      %p51 = scmp.ne.s32.totalorder %s40, %s41
      %p52 = scmp.eq.s32.totalorder %s18, 0
      %p53 = por %p51, %p52
      %p54 = scmp.ne.s32.totalorder %s40, %s41
      %p55 = scmp.eq.s32.totalorder %s19, 1
      %p56 = por %p54, %p55
      %p58 = scmp.ne.s32.totalorder %s41, %s57
      %p59 = scmp.eq.s32.totalorder %s19, 0
      %p60 = por %p58, %p59
      %s62 = sadd.s32 %s61, 1
      %p65 = scmp.eq.s32.totalorder %s13, 1
      %p66 = scmp.ne.s32.totalorder %s61, %s63
      %p67 = scmp.eq.s32.totalorder %s13, 0
      %p68 = por %p66, %p67
      %p69 = scmp.ne.s32.totalorder %s61, %s63
      %p70 = scmp.eq.s32.totalorder %s18, 1
      %p71 = por %p69, %p70
      %p72 = scmp.ne.s32.totalorder %s63, %s64
      %p73 = scmp.eq.s32.totalorder %s18, 0
      %p74 = por %p72, %p73
      %p75 = scmp.ne.s32.totalorder %s63, %s64
      %p76 = scmp.eq.s32.totalorder %s19, 1
      %p77 = por %p75, %p76
      %p79 = scmp.ne.s32.totalorder %s64, %s78
      %p80 = scmp.eq.s32.totalorder %s19, 0
      %p81 = por %p79, %p80
      %s83 = sadd.s32 %s82, 1
      %p86 = scmp.eq.s32.totalorder %s13, 1
      %p87 = scmp.ne.s32.totalorder %s82, %s84
      %p88 = scmp.eq.s32.totalorder %s13, 0
      %p89 = por %p87, %p88
      %p90 = scmp.ne.s32.totalorder %s82, %s84
      %p91 = scmp.eq.s32.totalorder %s18, 1
      %p92 = por %p90, %p91
      %p93 = scmp.ne.s32.totalorder %s84, %s85
      %p94 = scmp.eq.s32.totalorder %s18, 0
      %p95 = por %p93, %p94
      %p96 = scmp.ne.s32.totalorder %s84, %s85
      %p97 = scmp.eq.s32.totalorder %s19, 1
      %p98 = por %p96, %p97
      %p100 = scmp.ne.s32.totalorder %s85, %s99
      %p101 = scmp.eq.s32.totalorder %s19, 0
      %p102 = por %p100, %p101
      %s104 = sadd.s32 %s103, 1
      %p107 = scmp.eq.s32.totalorder %s13, 1
      %p108 = scmp.ne.s32.totalorder %s103, %s105
      %p109 = scmp.eq.s32.totalorder %s13, 0
      %p110 = por %p108, %p109
      %p111 = scmp.ne.s32.totalorder %s103, %s105
      %p112 = scmp.eq.s32.totalorder %s18, 1
      %p113 = por %p111, %p112
      %p114 = scmp.ne.s32.totalorder %s105, %s106
      %p115 = scmp.eq.s32.totalorder %s18, 0
      %p116 = por %p114, %p115
      %p117 = scmp.ne.s32.totalorder %s105, %s106
      %p118 = scmp.eq.s32.totalorder %s19, 1
      %p119 = por %p117, %p118
      %p121 = scmp.ne.s32.totalorder %s106, %s120
      %p122 = scmp.eq.s32.totalorder %s19, 0
      %p123 = por %p121, %p122
      %s124 = ssub.s32 %s21, %s28
      %s125 = ssub.s32 %s20, %s32
      %s126 = sor.u32 %s124, %s125
      %p127 = scmp.eq.s32.totalorder %s126, 0
      %s129 = sadd.s32 %s128, 1
      %s130 = scalar_select %p127, %s128, %s129
      %p133 = pneg %p127
      %p134 = scmp.eq.s32.totalorder %s13, 1
      %p135 = por %p133, %p134
      %p136 = scmp.ne.s32.totalorder %s128, %s131
      %p137 = scmp.eq.s32.totalorder %s13, 0
      %p138 = por %p136, %p137
      %p139 = scmp.ne.s32.totalorder %s128, %s131
      %p140 = scmp.eq.s32.totalorder %s18, 1
      %p141 = por %p139, %p140
      %p142 = scmp.ne.s32.totalorder %s131, %s132
      %p143 = scmp.eq.s32.totalorder %s18, 0
      %p144 = por %p142, %p143
      %p145 = scmp.ne.s32.totalorder %s131, %s132
      %p146 = scmp.eq.s32.totalorder %s19, 1
      %p147 = por %p145, %p146
      %p149 = scmp.ne.s32.totalorder %s132, %s148
      %p150 = scmp.eq.s32.totalorder %s19, 0
      %p151 = por %p149, %p150
      %p152 = scmp.le.s32.totalorder 1, %s13
      %p153 = scmp.lt.s32.totalorder %s13, 3
      %p154 = pnand %p152, %p153
      %p155 = pneg %p154
      // Predicated region
      $region9: #{tpu_custom_call.1} parent=5 // pred_check
        _
      $region10: #{tpu_custom_call.1} parent=5 // pred_check_branch
        %157 = sbr.rel (%p154) target = $region12
      $region11: #{tpu_custom_call.1} parent=5 // pred_region
        %s158 = ssub.s32 %s13, 1
        // Predicated region
        $region13: #{tpu_custom_call.1} parent=11 // pred_check
          %p159 = pneg %p74
        $region14: #{tpu_custom_call.1} parent=11 // pred_check_branch
          %161 = sbr.rel (%p159) target = $region16
        $region15: #{tpu_custom_call.1} parent=11 // pred_region
          _
        $region16: #{tpu_custom_call.1} parent=11 // pred_fallthru
          _
        // Predicated region
        $region17: #{tpu_custom_call.1} parent=11 // pred_check
          %p162 = pneg %p95
        $region18: #{tpu_custom_call.1} parent=11 // pred_check_branch
          %164 = sbr.rel (%p162) target = $region20
        $region19: #{tpu_custom_call.1} parent=11 // pred_region
          _
        $region20: #{tpu_custom_call.1} parent=11 // pred_fallthru
          _
        // Predicated region
        $region21: #{tpu_custom_call.1} parent=11 // pred_check
          %p165 = pneg %p116
        $region22: #{tpu_custom_call.1} parent=11 // pred_check_branch
          %167 = sbr.rel (%p165) target = $region24
        $region23: #{tpu_custom_call.1} parent=11 // pred_region
          _
        $region24: #{tpu_custom_call.1} parent=11 // pred_fallthru
          _
      $region12: #{tpu_custom_call.1} parent=5 // pred_fallthru
        _
      %p168 = scmp.lt.s32.totalorder %s13, 2
      // Predicated region
      $region25: #{tpu_custom_call.1} parent=5 // pred_check
        %p169 = pneg %p168
      $region26: #{tpu_custom_call.1} parent=5 // pred_check_branch
        %171 = sbr.rel (%p169) target = $region28
      $region27: #{tpu_custom_call.1} parent=5 // pred_region
        // Predicated region
        $region29: #{tpu_custom_call.1} parent=27 // pred_check
          %p172 = pneg %p47
        $region30: #{tpu_custom_call.1} parent=27 // pred_check_branch
          %174 = sbr.rel (%p172) target = $region32
        $region31: #{tpu_custom_call.1} parent=27 // pred_region
          %s175 = smul.u32 2, %s20
          %p176 = scmp.lt.s32.totalorder %s21, 1
          %s177 = scalar_select %p176, %s21, 1
          %p178 = scmp.lt.s32.totalorder %s175, 1
          %s179 = scalar_select %p178, %s175, 1
          %s180 = smul.addr %s177, 2
          %s181 = sadd.s32 %s179, %s180
          %s182 = smul.addr %s181, 4
          %s183 = scalar_lea.vmem %s0, %s182
          %s184 = smul.u32 2, %s20
        $region32: #{tpu_custom_call.1} parent=27 // pred_fallthru
          _
      $region28: #{tpu_custom_call.1} parent=5 // pred_fallthru
        _
      %p185 = scmp.le.s32.totalorder 1, %s13
      %p186 = scmp.lt.s32.totalorder %s13, 3
      %p187 = pnand %p185, %p186
      %p188 = pneg %p187
      // Predicated region
      $region33: #{tpu_custom_call.1} parent=5 // pred_check
        _
      $region34: #{tpu_custom_call.1} parent=5 // pred_check_branch
        %190 = sbr.rel (%p187) target = $region36
      $region35: #{tpu_custom_call.1} parent=5 // pred_region
        %s191 = ssub.s32 %s13, 1
        %s192 = smul.u32 2, %s22
        %p193 = scmp.lt.s32.totalorder %s23, 1
        %s194 = scalar_select %p193, %s23, 1
        %p195 = scmp.lt.s32.totalorder %s192, 1
        %s196 = scalar_select %p195, %s192, 1
        %s197 = smul.addr %s194, 2
        %s198 = sadd.s32 %s196, %s197
        %s199 = smul.addr %s198, 4
        %s200 = scalar_lea.vmem %s0, %s199
        %p201 = pneg %p53
        %p202 = pneg %p50
        %p203 = pneg %p74
        %p204 = pneg %p71
        %p205 = pneg %p95
        %p206 = pneg %p92
        %p207 = pneg %p116
        %p208 = pneg %p113
        %p209 = pneg %p144
        %p210 = pneg %p141
        %s211 = sand.u32 %s131, 1
        %s212 = scalar_lea.sflag [#allocation4], %s211
        %s213 = sand.u32 %s131, 1
        %s214 = smul.addr %s213, 16
        %s215 = scalar_lea.vmem [#allocation3], %s214
        %s216 = smul.u32 2, %s22
        %p217 = scmp.lt.s32.totalorder %s23, 1
        %s218 = scalar_select %p217, %s23, 1
        %p219 = scmp.lt.s32.totalorder %s216, 1
        %s220 = scalar_select %p219, %s216, 1
        %s221 = smul.addr %s218, 2
        %s222 = sadd.s32 %s220, %s221
        %s223 = smul.addr %s222, 4
        %s224 = scalar_lea.vmem %s0, %s223
        %s225 = smul.u32 2, %s22
        %s226 = smul.u32 2, %s22
        %p227 = scmp.eq.s32.totalorder %s23, 0
        // Predicated region
        $region37: #{tpu_custom_call.1} parent=35 // pred_check
          %p228 = pneg %p227
        $region38: #{tpu_custom_call.1} parent=35 // pred_check_branch
          %230 = sbr.rel (%p228) target = $region40
        $region39: #{tpu_custom_call.1} parent=35 // pred_region
          %v231 = vlaneseq
          %v232 = vand.u32 %v231, 127
          %v233 = vadd.s32 %v232, 128
          %s234 = smul.u32 %s22, 256
          %v235 = vstv %s234
          %v236 = vadd.s32 %v232, %v235
          %v237 = vadd.s32 %v233, %v235
          %v238 = vcvt.s32.f32 %v236
          %v239 = vcvt.s32.f32 %v237
          %v240 = vadd.f32 %v238, 0.5
          %v241 = vadd.f32 %v239, 0.5
          %v242 = vmul.f32 %v240, 0.0625
          %v243 = vmul.f32 %v241, 0.0625
          %v244 = vfloor.f32 %v242
          %v245 = vfloor.f32 %v243
          %v246 = vmul.f32 %v244, 16.0
          %v247 = vmul.f32 %v245, 16.0
          %v248 = vsub.f32 %v238, %v246
          %v249 = vsub.f32 %v239, %v247
          %v250 = vmul.f32 %v244, 0.13333334
          %v251 = vmul.f32 %v245, 0.13333334
          %v252 = vsub.f32 %v250, 1.0
          %v253 = vsub.f32 %v251, 1.0
          %v254 = vmul.f32 %v248, 0.13333334
          %v255 = vmul.f32 %v249, 0.13333334
          %v256 = vsub.f32 %v254, 1.0
          %v257 = vsub.f32 %v255, 1.0
          %v258 = vld [vmem:[%s2] sm:$0xff]
          %260 = vset.pattern.permute.xlu0 0
          %261 = vperm.xlu0 %260, %v258
          %v262 = vpop.permute.xlu0 %261
          %v264 = vmul.f32 %v262, %v252
          %v265 = vmul.f32 %v262, %v253
          %266 = vset.pattern.permute.xlu0 1
          %267 = vperm.xlu0 %266, %v258
          %v268 = vpop.permute.xlu0 %267
          %v270 = vmul.f32 %v268, %v256
          %v271 = vmul.f32 %v268, %v257
          %v272 = vadd.f32 %v264, %v270
          %v273 = vadd.f32 %v265, %v271
          %v274 = vld [vmem:[%s3] sm:$0xff]
          %276 = vset.pattern.permute.xlu0 0
          %277 = vperm.xlu0 %276, %v274
          %v278 = vpop.permute.xlu0 %277
          %v280 = vadd.f32 %v272, %v278
          %v281 = vadd.f32 %v273, %v278
          %282 = vst [vmem:[#allocation2] sm:$0xff] %v280
          %283 = vst [vmem:[#allocation2 + $0x8] sm:$0xff] %v281
        $region40: #{tpu_custom_call.1} parent=35 // pred_fallthru
          _
        %v284 = vld [vmem:[%s1] sm:$0xff]
        %v285 = vld [vmem:[%s224] sm:$0xff]
        %v286 = vld [vmem:[#allocation2] sm:$0xff]
        %v287 = vld [vmem:[#allocation2 + $0x8] sm:$0xff]
        %v289 = vcombine.high %v285, %v285
        %vm290 = vcmask 31744
        %v292 = vsel %vm290, %v284, 0
        %vm294 = vcmask 1043456
        %v295 = vsel %vm294, %v285, 0
        %v297 = vsel %vm294, %v289, 0
        %299 = vmatprep.subr.mxu0 0.0
        %300 = vmatpush1.msra.mxu0 0.0
        %301 = vmatprep.subr.mxu0 0.0
        %302 = vmatpush1.msra.mxu0 0.0
        %303 = vmatprep.subr.mxu0 0.0
        %304 = vmatpush1.msra.mxu0 0.0
        %305 = vmatprep.subr.mxu0 0.0
        %306 = vmatpush1.msra.mxu0 0.0
        %307 = vmatprep.subr.mxu0 0.0
        %308 = vmatpush1.msra.mxu0 0.0
        %309 = vmatprep.subr.mxu0 0.0
        %310 = vmatpush1.msra.mxu0 0.0
        %311 = vmatprep.subr.mxu0 0.0
        %312 = vmatpush1.msra.mxu0 0.0
        %313 = vmatprep.subr.mxu0 0.0
        %314 = vmatpush1.msra.mxu0 0.0
        %315 = vmatprep.subr.mxu0 0.0
        %316 = vmatpush1.msra.mxu0 0.0
        %317 = vmatprep.subr.mxu0 0.0
        %318 = vmatpush1.msra.mxu0 0.0
        %319 = vmatprep.subr.mxu0 0.0
        %320 = vmatpush1.msra.mxu0 0.0
        %321 = vmatprep.subr.mxu0 0.0
        %322 = vmatpush1.msra.mxu0 0.0
        %323 = vmatprep.subr.mxu0 0.0
        %324 = vmatpush1.msra.mxu0 0.0
        %325 = vmatprep.subr.mxu0 0.0
        %326 = vmatpush1.msra.mxu0 0.0
        %327 = vmatprep.subr.mxu0 0.0
        %328 = vmatpush1.msra.mxu0 0.0
        %329 = vmatprep.subr.mxu0 %v297
        %330 = vmatpush1.msra.mxu0 %v295
        %331 = vmatprep.subr.mxu0 0.0
        %332 = vmatpush2.msra.mxu0 0.0
        %333 = vmatprep.subr.mxu0 0.0
        %334 = vmatpush2.msra.mxu0 0.0
        %335 = vmatprep.subr.mxu0 0.0
        %336 = vmatpush2.msra.mxu0 0.0
        %337 = vmatprep.subr.mxu0 0.0
        %338 = vmatpush2.msra.mxu0 0.0
        %339 = vmatprep.subr.mxu0 0.0
        %340 = vmatpush2.msra.mxu0 0.0
        %341 = vmatprep.subr.mxu0 0.0
        %342 = vmatpush2.msra.mxu0 0.0
        %343 = vmatprep.subr.mxu0 0.0
        %344 = vmatpush2.msra.mxu0 0.0
        %345 = vmatprep.subr.mxu0 0.0
        %346 = vmatpush2.msra.mxu0 0.0
        %347 = vmatprep.subr.mxu0 0.0
        %348 = vmatpush2.msra.mxu0 0.0
        %349 = vmatprep.subr.mxu0 0.0
        %350 = vmatpush2.msra.mxu0 0.0
        %351 = vmatprep.subr.mxu0 0.0
        %352 = vmatpush2.msra.mxu0 0.0
        %353 = vmatprep.subr.mxu0 0.0
        %354 = vmatpush2.msra.mxu0 0.0
        %355 = vmatprep.subr.mxu0 0.0
        %356 = vmatpush2.msra.mxu0 0.0
        %357 = vmatprep.subr.mxu0 0.0
        %358 = vmatpush2.msra.mxu0 0.0
        %359 = vmatprep.subr.mxu0 0.0
        %360 = vmatpush2.msra.mxu0 0.0
        %361 = vmatprep.subr.mxu0 0.0
        %362 = vmatpush2.msra.mxu0 0.0
        %363 = vmatprep.mubr.f32.mxu0 0.0
        %364 = vmatmul.mubr.f32.gmra.mxu0 %v292
        %v365 = vpop.f32.mrf.mxu0
        %v366 = vadd.f32 %v286, %v365
        %v367 = vpop.f32.mrf.mxu0
        %v368 = vadd.f32 %v287, %v367
        %369 = vdwg.mxu0
        %370 = vst [vmem:[%s215] sm:$0xff] %v366
        %371 = vst [vmem:[%s215 + $0x8] sm:$0xff] %v368
        %s372 = sand.u32 %s131, 1
        %s373 = scalar_lea.sflag [#allocation4], %s372
        %s374 = sand.u32 %s131, 1
        %s375 = smul.addr %s374, 16
        %s376 = scalar_lea.vmem [#allocation3], %s375
        // Predicated region
        $region41: #{tpu_custom_call.1} parent=35 // pred_check
          %p377 = pneg %p141
        $region42: #{tpu_custom_call.1} parent=35 // pred_check_branch
          %379 = sbr.rel (%p377) target = $region44
        $region43: #{tpu_custom_call.1} parent=35 // pred_region
          %s380 = smul.u32 2, %s22
          %s382 = ssub.s32 256, 256
          %383 = vsyncadd %s373, %s382
          %s384 = smul.addr %s23, 2
          %s385 = sadd.s32 %s380, %s384
          %s386 = smul.addr %s385, 128
          %s387 = scalar_lea.hbm %s4, %s386
          %s389 = sshll.u32 %s376, 4
          %s390 = int_to_ptr.vmem [resolvable:$true] %s389
          %392 = dma.vmem_to_hbm [thread:$0]  %s390, 256, %s387, %s373
        $region44: #{tpu_custom_call.1} parent=35 // pred_fallthru
          _
      $region36: #{tpu_custom_call.1} parent=5 // pred_fallthru
        _
      %p393 = scmp.le.s32.totalorder 2, %s13
      // Predicated region
      $region45: #{tpu_custom_call.1} parent=5 // pred_check
        %p394 = pneg %p393
      $region46: #{tpu_custom_call.1} parent=5 // pred_check_branch
        %396 = sbr.rel (%p394) target = $region48
      $region47: #{tpu_custom_call.1} parent=5 // pred_region
        %s397 = ssub.s32 %s13, 2
        // Predicated region
        $region49: #{tpu_custom_call.1} parent=47 // pred_check
          %p398 = pneg %p147
        $region50: #{tpu_custom_call.1} parent=47 // pred_check_branch
          %400 = sbr.rel (%p398) target = $region52
        $region51: #{tpu_custom_call.1} parent=47 // pred_region
          %s401 = sand.u32 %s132, 1
          %s402 = scalar_lea.sflag [#allocation4], %s401
          %s403 = sand.u32 %s132, 1
          %s404 = smul.addr %s403, 16
          %s405 = scalar_lea.vmem [#allocation3], %s404
          %406 = dma.done %s402, 256
        $region52: #{tpu_custom_call.1} parent=47 // pred_fallthru
          _
      $region48: #{tpu_custom_call.1} parent=5 // pred_fallthru
        _
    $region6: #{tpu_custom_call.1} parent=1 // loop_footer
      %s17 = sadd.s32 1, %s13
    $region7: #{tpu_custom_call.1} parent=1 // loop_footer_branch
      %12 = sbr.rel target = $region3
    $region8: #{tpu_custom_call.1} parent=1 // loop_exit
      _
    %407 = vsyncpa [#allocation4], 1
    %s408 = scalar_lea.sflag [#allocation4], 1
    %409 = vsyncpa %s408, 1

</llo_original>
